<compile_context>
chip_gen: v6e
topology: v6e:2x2x1
jax: 0.10.0
libtpu: 0.0.40
codegen_flags: <defaults>
</compile_context>

<pallas_src>
import functools

import jax
import jax.numpy as jnp
from jax.experimental import pallas as pl
from jax.experimental.pallas import tpu as pltpu

DROPOUT_RATE = 0.2
# Drop an element iff hash_u32 < DROPOUT_RATE * 2^32  (keep prob = 0.8).
_DROP_THRESHOLD = int(round(DROPOUT_RATE * (1 << 32)))  # 858993459 < 2^31


def _wrap_i32(c):
    """Python int -> equivalent value in signed int32 two's-complement range."""
    c &= 0xFFFFFFFF
    return c - (1 << 32) if c >= (1 << 31) else c


_GOLDEN = _wrap_i32(0x9E3779B9)
_MIX1 = _wrap_i32(0x7FEB352D)
_MIX2 = _wrap_i32(0x846CA68B)


def _keep_mask(shape, row_offset, n_cols, seed):
    """Bernoulli(keep = 1 - DROPOUT_RATE) mask from a counter-based hash.

    Pure int32 arithmetic (wrapping mul, xor, masked shifts) so it lowers both
    on Mosaic (VPU) and in interpret mode.  Arithmetic >> followed by a mask
    reproduces a logical shift.
    """
    rows = jax.lax.broadcasted_iota(jnp.int32, shape, 0) + row_offset
    cols = jax.lax.broadcasted_iota(jnp.int32, shape, 1)
    h = rows * jnp.int32(n_cols) + cols + seed * jnp.int32(_GOLDEN)
    h = (h ^ ((h >> 16) & 0xFFFF)) * jnp.int32(_MIX1)
    h = (h ^ ((h >> 15) & 0x1FFFF)) * jnp.int32(_MIX2)
    h = h ^ ((h >> 16) & 0xFFFF)
    # Unsigned compare uint32(h) >= threshold done on the signed representation.
    return (h < 0) | (h >= jnp.int32(_DROP_THRESHOLD))


def _ffw_kernel(seed_ref, x_ref, w1_ref, b1_ref, w2_ref, b2_ref, o_ref, acc_ref,
                *, tm, sub, n_sub, n_cols, apply_dropout):
    k = pl.program_id(1)
    # Keep program_id / SMEM scalar reads OUTSIDE the pl.when bodies: binding
    # them inside the cond branch breaks interpret-mode lowering.
    row0 = pl.program_id(0) * tm          # global row offset of this tile
    seed = seed_ref[0]

    @pl.when(k == 0)
    def _init():
        acc_ref[...] = jnp.zeros_like(acc_ref)

    x = x_ref[...]
    # Stream this hidden-dim slab in `sub`-wide chunks so the f32 intermediate
    # h stays small (no oversized spill-prone (tm, th) live array).  n_sub is
    # a small static count -> fully unrolled at trace time.
    for s in range(n_sub):
        w1c = w1_ref[:, pl.ds(s * sub, sub)]                   # (E, sub)
        b1c = b1_ref[:, pl.ds(s * sub, sub)]                   # (1, sub)
        h = jax.lax.dot_general(
            x, w1c, dimension_numbers=(((1,), (0,)), ((), ())),
            preferred_element_type=jnp.float32)
        h = jnp.maximum(h + b1c.astype(jnp.float32), 0.0)
        w2c = w2_ref[pl.ds(s * sub, sub), :]                   # (sub, E)
        acc_ref[...] += jax.lax.dot_general(
            h.astype(w2_ref.dtype), w2c,
            dimension_numbers=(((1,), (0,)), ((), ())),
            preferred_element_type=jnp.float32)

    @pl.when(k == pl.num_programs(1) - 1)
    def _finalize():
        y = acc_ref[...] + b2_ref[...].astype(jnp.float32)
        if apply_dropout:
            keep = _keep_mask(y.shape, row0, n_cols, seed)
            y = jnp.where(keep, y * (1.0 / (1.0 - DROPOUT_RATE)), 0.0)
        o_ref[...] = y.astype(o_ref.dtype)


def _round_up(x, m):
    return ((x + m - 1) // m) * m


def _device_vmem_budget():
    """(tile_budget_bytes, vmem_limit_bytes) for the current backend."""
    try:
        kind = jax.devices()[0].device_kind.lower()
    except Exception:
        kind = ""
    if "v5" in kind or "v6" in kind:
        # 128 MiB physical VMEM per TensorCore.
        return 80 * 1024 * 1024, 100 * 1024 * 1024
    # v7x has 64 MiB per TensorCore; unknown/CPU-interpret gets the safe cap.
    return 40 * 1024 * 1024, 48 * 1024 * 1024


def _select_tiles(M, E, H, act_bytes, w_bytes, tile_budget):
    """Pick (tm, th, Hp): 128-aligned MXU-shaped tiles that fit the VMEM budget."""
    Hp = _round_up(H, 128)
    th = next(t for t in (512, 256, 128) if Hp % t == 0)
    sub = 256 if (th % 256 == 0 and th > 256) else th

    if M < 128:
        return _round_up(max(M, 1), 8), th, Hp

    cap = _round_up(M, 128)
    tm_cands = [t for t in (1024, 768, 640, 512, 384, 256, 128) if t <= cap]
    if not tm_cands:
        tm_cands = [cap]

    def footprint(tm):
        return (2 * tm * E * act_bytes          # x row tile (double buffered)
                + 2 * tm * E * act_bytes        # output tile
                + 2 * E * th * w_bytes          # W1^T slab
                + 2 * th * E * w_bytes          # W2^T slab
                + 2 * (th + E) * w_bytes        # biases
                + tm * E * 4                    # f32 accumulator scratch
                + tm * sub * 4                  # live hidden chunk
                + 2 * 1024 * 1024)              # compiler scratch headroom

    tm = tm_cands[-1]
    for cand in tm_cands:
        if footprint(cand) <= tile_budget:
            tm = cand
            break
    return tm, th, Hp


def ffw_forward(x, w1, b1, w2, b2, *, seed=0, training=True):
    """Fused FFW forward.

    x : (B, T, E)
    w1: (4E, E), b1: (4E,)   -- PyTorch nn.Linear (out_features, in_features)
    w2: (E, 4E), b2: (E,)
    """
    B, T, E = x.shape
    H = w1.shape[0]          # 4 * E
    M = B * T

    act_bytes = jnp.dtype(x.dtype).itemsize
    w_bytes = jnp.dtype(w1.dtype).itemsize
    tile_budget, vmem_limit = _device_vmem_budget()
    tm, th, Hp = _select_tiles(M, E, H, act_bytes, w_bytes, tile_budget)

    Mp = _round_up(M, tm)
    xm = x.reshape(M, E)
    if Mp != M:
        xm = jnp.pad(xm, ((0, Mp - M), (0, 0)))

    # Canonical (M,K)x(K,N) operand layouts so both matmuls feed the MXU with
    # no in-kernel transposes; hoisted/constant-folded under jit with frozen
    # weights.
    w1t = w1.T                       # (E, H)
    w2t = w2.T                       # (H, E)
    b1r = b1.reshape(1, H)
    b2r = b2.reshape(1, E)
    if Hp != H:                      # zero-pad hidden dim (mathematical no-op)
        w1t = jnp.pad(w1t, ((0, 0), (0, Hp - H)))
        w2t = jnp.pad(w2t, ((0, Hp - H), (0, 0)))
        b1r = jnp.pad(b1r, ((0, 0), (0, Hp - H)))

    sub = 256 if (th % 256 == 0 and th > 256) else th
    n_sub = th // sub

    seed_arr = jnp.array([seed], dtype=jnp.int32)
    grid = (Mp // tm, Hp // th)      # rows "parallel" (megacore), hidden "arbitrary"

    kernel = functools.partial(
        _ffw_kernel, tm=tm, sub=sub, n_sub=n_sub, n_cols=E,
        apply_dropout=bool(training))

    out = pl.pallas_call(
        kernel,
        out_shape=jax.ShapeDtypeStruct((Mp, E), x.dtype),
        grid_spec=pltpu.PrefetchScalarGridSpec(
            num_scalar_prefetch=1,                               # dropout seed -> SMEM
            grid=grid,
            in_specs=[
                pl.BlockSpec((tm, E), lambda i, k, s: (i, 0)),   # x row tile
                pl.BlockSpec((E, th), lambda i, k, s: (0, k)),   # W1^T hidden slab
                pl.BlockSpec((1, th), lambda i, k, s: (0, k)),   # b1 hidden slab
                pl.BlockSpec((th, E), lambda i, k, s: (k, 0)),   # W2^T hidden slab
                pl.BlockSpec((1, E), lambda i, k, s: (0, 0)),    # b2
            ],
            out_specs=pl.BlockSpec((tm, E), lambda i, k, s: (i, 0)),
            scratch_shapes=[pltpu.VMEM((tm, E), jnp.float32)],   # f32 accumulator
        ),
        compiler_params=pltpu.CompilerParams(
            dimension_semantics=("parallel", "arbitrary"),
            vmem_limit_bytes=vmem_limit,
        ),
    )(seed_arr, xm, w1t, b1r, w2t, b2r)

    if Mp != M:
        out = out[:M]
    return out.reshape(B, T, E)


def ffw_reference(x, w1, b1, w2, b2):
    """Pure-JAX eval-mode reference (no dropout)."""
    h = jnp.maximum(
        jnp.einsum("bte,he->bth", x, w1, precision=jax.lax.Precision.HIGHEST) + b1,
        0.0)
    return jnp.einsum("bth,eh->bte", h, w2,
                      precision=jax.lax.Precision.HIGHEST) + b2


def _make_params(key, E):
    H = 4 * E
    k1, kb1, k2, kb2 = jax.random.split(key, 4)
    bound1 = 1.0 / (E ** 0.5)
    w1 = jax.random.uniform(k1, (H, E), jnp.float32, -bound1, bound1)
    b1 = jax.random.uniform(kb1, (H,), jnp.float32, -bound1, bound1)
    bound2 = 1.0 / (H ** 0.5)
    w2 = jax.random.uniform(k2, (E, H), jnp.float32, -bound2, bound2)
    b2 = jax.random.uniform(kb2, (E,), jnp.float32, -bound2, bound2)
    return w1, b1, w2, b2


if __name__ == "__main__":
    key = jax.random.PRNGKey(0)

    # ---- Small shapes implied by the module: batch=2, seq=8, n_embeddings=32.
    B, T, E = 2, 8, 32
    kx, kp, key = jax.random.split(key, 3)
    x = jax.random.normal(kx, (B, T, E), dtype=jnp.float32)
    w1, b1, w2, b2 = _make_params(kp, E)

    y_eval = ffw_forward(x, w1, b1, w2, b2, training=False)
    jax.block_until_ready(y_eval)
    assert y_eval.shape == (B, T, E) and y_eval.dtype == x.dtype
    ref = ffw_reference(x, w1, b1, w2, b2)
    assert bool(jnp.allclose(y_eval, ref, rtol=2e-2, atol=2e-2))

    y_train = ffw_forward(x, w1, b1, w2, b2, seed=123, training=True)
    jax.block_until_ready(y_train)
    assert y_train.shape == (B, T, E) and y_train.dtype == x.dtype

    # ---- Larger config exercising the 2-D (row-tile, hidden-slab) grid and
    # the in-kernel hidden-dim sub-chunking: M=512 rows, H=1024 (2 slabs).
    B2, T2, E2 = 2, 256, 256
    kx2, kp2, key = jax.random.split(key, 3)
    x2 = jax.random.normal(kx2, (B2, T2, E2), dtype=jnp.float32)
    w1b, b1b, w2b, b2b = _make_params(kp2, E2)

    y2_eval = ffw_forward(x2, w1b, b1b, w2b, b2b, training=False)
    jax.block_until_ready(y2_eval)
    ref2 = ffw_reference(x2, w1b, b1b, w2b, b2b)
    assert bool(jnp.allclose(y2_eval, ref2, rtol=2e-2, atol=2e-2))

    y2_train = ffw_forward(x2, w1b, b1b, w2b, b2b, seed=7, training=True)
    jax.block_until_ready(y2_train)
    assert y2_train.shape == (B2, T2, E2)
    drop_frac = float(jnp.mean((y2_train == 0.0).astype(jnp.float32)))
    assert 0.14 < drop_frac < 0.26, f"unexpected dropout fraction {drop_frac}"

    # ---- bf16 fast path (halves weight DMA bytes, bf16 MXU, f32 accumulate).
    x_bf = x2.astype(jnp.bfloat16)
    w1_bf, w2_bf = w1b.astype(jnp.bfloat16), w2b.astype(jnp.bfloat16)
    y_bf = ffw_forward(x_bf, w1_bf, b1b, w2_bf, b2b, training=False)
    jax.block_until_ready(y_bf)
    assert y_bf.shape == (B2, T2, E2) and y_bf.dtype == jnp.bfloat16
    ref_bf = ffw_reference(x_bf.astype(jnp.float32), w1_bf.astype(jnp.float32),
                           b1b, w2_bf.astype(jnp.float32), b2b)
    assert bool(jnp.allclose(y_bf.astype(jnp.float32), ref_bf, rtol=1e-1, atol=1e-1))

    print("KERNEL_OK")
</pallas_src>

<mosaic_0001>
module attributes {stable_mosaic.version = 11 : i64} {
  func.func @_ffw_kernel(%arg0: i32, %arg1: i32, %arg2: memref<1xi32, #tpu.memory_space<smem>>, %arg3: memref<16x32xf32, #tpu.memory_space<vmem>>, %arg4: memref<32x128xf32, #tpu.memory_space<vmem>>, %arg5: memref<1x128xf32, #tpu.memory_space<vmem>>, %arg6: memref<128x32xf32, #tpu.memory_space<vmem>>, %arg7: memref<1x32xf32, #tpu.memory_space<vmem>>, %arg8: memref<16x32xf32, #tpu.memory_space<vmem>>, %arg9: memref<16x32xf32, #tpu.memory_space<vmem>>) attributes {dimension_semantics = [#tpu.dimension_semantics<parallel>, #tpu.dimension_semantics<arbitrary>], iteration_bounds = array<i64: 1, 1>, scalar_prefetch = 1 : i64, scratch_operands = 1 : i64, tpu.core_type = #tpu.core_type<tc>, window_params = [{transform_indices = @transform_0, window_bounds = array<i64: 16, 32>}, {transform_indices = @transform_1, window_bounds = array<i64: 32, 128>}, {transform_indices = @transform_2, window_bounds = array<i64: 1, 128>}, {transform_indices = @transform_3, window_bounds = array<i64: 128, 32>}, {pipeline_mode = #tpu.pipeline_mode<synchronous>, transform_indices = @transform_4, window_bounds = array<i64: 1, 32>}, {transform_indices = @transform_5, window_bounds = array<i64: 16, 32>}]} {
    %c0_i32 = arith.constant 0 : i32
    %0 = arith.cmpi eq, %arg1, %c0_i32 : i32
    %1 = arith.extui %0 : i1 to i32
    %c0_i32_0 = arith.constant 0 : i32
    %2 = arith.cmpi ne, %1, %c0_i32_0 : i32
    scf.if %2 {
      %cst_16 = arith.constant 0.000000e+00 : f32
      %19 = vector.broadcast %cst_16 : f32 to vector<16x32xf32>
      %c0_17 = arith.constant 0 : index
      %c0_18 = arith.constant 0 : index
      %20 = vector.load %arg9[%c0_17, %c0_18] : memref<16x32xf32, #tpu.memory_space<vmem>>, vector<16x32xf32>
      tpu.vector_store %arg9[%c0_17, %c0_18], %19 {strides = array<i32>} : memref<16x32xf32, #tpu.memory_space<vmem>>, vector<16x32xf32>,
    } else {
    }
    %c0 = arith.constant 0 : index
    %c0_1 = arith.constant 0 : index
    %3 = vector.load %arg3[%c0, %c0_1] : memref<16x32xf32, #tpu.memory_space<vmem>>, vector<16x32xf32>
    %c0_2 = arith.constant 0 : index
    %c0_3 = arith.constant 0 : index
    %4 = vector.load %arg4[%c0_2, %c0_3] : memref<32x128xf32, #tpu.memory_space<vmem>>, vector<32x128xf32>
    %c0_4 = arith.constant 0 : index
    %c0_5 = arith.constant 0 : index
    %5 = vector.load %arg5[%c0_4, %c0_5] : memref<1x128xf32, #tpu.memory_space<vmem>>, vector<1x128xf32>
    %cst = arith.constant dense<0.000000e+00> : vector<16x128xf32>
    %6 = tpu.matmul %3, %4, %cst {dimension_numbers = #tpu.dot_dimension_numbers<[1], [0], [0], [1], [0, 0, 1, 1], [], []>} : vector<16x32xf32>, vector<32x128xf32>, vector<16x128xf32> -> vector<16x128xf32>
    %7 = vector.broadcast %5 : vector<1x128xf32> to vector<16x128xf32>
    %8 = arith.addf %6, %7 : vector<16x128xf32>
    %cst_6 = arith.constant 0.000000e+00 : f32
    %9 = vector.broadcast %cst_6 : f32 to vector<16x128xf32>
    %10 = arith.maximumf %8, %9 : vector<16x128xf32>
    %c0_7 = arith.constant 0 : index
    %c0_8 = arith.constant 0 : index
    %11 = vector.load %arg6[%c0_7, %c0_8] : memref<128x32xf32, #tpu.memory_space<vmem>>, vector<128x32xf32>
    %c0_9 = arith.constant 0 : index
    %c0_10 = arith.constant 0 : index
    %12 = vector.load %arg9[%c0_9, %c0_10] : memref<16x32xf32, #tpu.memory_space<vmem>>, vector<16x32xf32>
    %cst_11 = arith.constant dense<0.000000e+00> : vector<16x32xf32>
    %13 = tpu.matmul %10, %11, %cst_11 {dimension_numbers = #tpu.dot_dimension_numbers<[1], [0], [0], [1], [0, 0, 1, 1], [], []>} : vector<16x128xf32>, vector<128x32xf32>, vector<16x32xf32> -> vector<16x32xf32>
    %14 = arith.addf %12, %13 : vector<16x32xf32>
    %c0_12 = arith.constant 0 : index
    %c0_13 = arith.constant 0 : index
    %15 = vector.load %arg9[%c0_12, %c0_13] : memref<16x32xf32, #tpu.memory_space<vmem>>, vector<16x32xf32>
    tpu.vector_store %arg9[%c0_12, %c0_13], %14 {strides = array<i32>} : memref<16x32xf32, #tpu.memory_space<vmem>>, vector<16x32xf32>,
    %c0_i32_14 = arith.constant 0 : i32
    %16 = arith.cmpi eq, %arg1, %c0_i32_14 : i32
    %17 = arith.extui %16 : i1 to i32
    %c0_i32_15 = arith.constant 0 : i32
    %18 = arith.cmpi ne, %17, %c0_i32_15 : i32
    scf.if %18 {
      %c0_16 = arith.constant 0 : index
      %c0_17 = arith.constant 0 : index
      %19 = vector.load %arg9[%c0_16, %c0_17] : memref<16x32xf32, #tpu.memory_space<vmem>>, vector<16x32xf32>
      %c0_18 = arith.constant 0 : index
      %c0_19 = arith.constant 0 : index
      %20 = vector.load %arg7[%c0_18, %c0_19] : memref<1x32xf32, #tpu.memory_space<vmem>>, vector<1x32xf32>
      %21 = vector.broadcast %20 : vector<1x32xf32> to vector<16x32xf32>
      %22 = arith.addf %19, %21 : vector<16x32xf32>
      %c0_20 = arith.constant 0 : index
      %c0_21 = arith.constant 0 : index
      %23 = vector.load %arg8[%c0_20, %c0_21] : memref<16x32xf32, #tpu.memory_space<vmem>>, vector<16x32xf32>
      tpu.vector_store %arg8[%c0_20, %c0_21], %22 {strides = array<i32>} : memref<16x32xf32, #tpu.memory_space<vmem>>, vector<16x32xf32>,
    } else {
    }
    return
  }
  func.func @transform_0(%arg0: i32, %arg1: i32, %arg2: memref<1xi32, #tpu.memory_space<smem>>) -> (i32, i32) {
    %c0_i32 = arith.constant 0 : i32
    %c0_i32_0 = arith.constant 0 : i32
    return %arg0, %c0_i32 : i32, i32
  }
  func.func @transform_1(%arg0: i32, %arg1: i32, %arg2: memref<1xi32, #tpu.memory_space<smem>>) -> (i32, i32) {
    %c0_i32 = arith.constant 0 : i32
    %c0_i32_0 = arith.constant 0 : i32
    return %c0_i32, %arg1 : i32, i32
  }
  func.func @transform_2(%arg0: i32, %arg1: i32, %arg2: memref<1xi32, #tpu.memory_space<smem>>) -> (i32, i32) {
    %c0_i32 = arith.constant 0 : i32
    %c0_i32_0 = arith.constant 0 : i32
    return %c0_i32, %arg1 : i32, i32
  }
  func.func @transform_3(%arg0: i32, %arg1: i32, %arg2: memref<1xi32, #tpu.memory_space<smem>>) -> (i32, i32) {
    %c0_i32 = arith.constant 0 : i32
    %c0_i32_0 = arith.constant 0 : i32
    return %arg1, %c0_i32 : i32, i32
  }
  func.func @transform_4(%arg0: i32, %arg1: i32, %arg2: memref<1xi32, #tpu.memory_space<smem>>) -> (i32, i32) {
    %c0_i32 = arith.constant 0 : i32
    %c0_i32_0 = arith.constant 0 : i32
    %c0_i32_1 = arith.constant 0 : i32
    return %c0_i32, %c0_i32_0 : i32, i32
  }
  func.func @transform_5(%arg0: i32, %arg1: i32, %arg2: memref<1xi32, #tpu.memory_space<smem>>) -> (i32, i32) {
    %c0_i32 = arith.constant 0 : i32
    %c0_i32_0 = arith.constant 0 : i32
    return %arg0, %c0_i32 : i32, i32
  }
}

</mosaic_0001>

<llo_original>
// kernel: tpu_custom_call.1
$region0: #{tpu_custom_call.1}
  #allocation0 [shape = 'u32[]', space=smem, size = 0x4, offset = 0x4, fixed_abs, tag = 'smem constant byte address 0x4 - core index']
  #allocation1 [shape = 'u32[144,128]{1,0:T(1,128)}', space=vmem, size = 0x12000, scoped, tag = 'internal scratch']
  #allocation2 [shape = 'f32[16,32]{1,0:T(8,128)}', space=vmem, size = 0x2000, scoped, tag = 'scratch operand']
  #allocation3 [shape = 's32[1]{0}', space=sflag, size = 0x4, scoped, tag = 'scoped memory for tpu_custom_call.1']
  #allocation4 [shape = 's32[1]{0:T(128)S(6)}', space=smem, size = 0x200, scoped, tag = 'prefetched SMEM operand 0']
  %s0 = inlined_call_operand.<no memory space> [shape: s32[1], index: 0, kind: input, shape index: {}]
  %s1 = inlined_call_operand.vmem [shape: f32[16,32], index: 1, kind: input, shape index: {}]
  %s2 = inlined_call_operand.vmem [shape: f32[32,128], index: 2, kind: input, shape index: {}]
  %s3 = inlined_call_operand.vmem [shape: f32[1,128], index: 3, kind: input, shape index: {}]
  %s4 = inlined_call_operand.vmem [shape: f32[128,32], index: 4, kind: input, shape index: {}]
  %s5 = inlined_call_operand.vmem [shape: f32[1,32], index: 5, kind: input, shape index: {}]
  %s6 = inlined_call_operand.hbm [shape: f32[16,32], index: 6, kind: output, shape index: {}]
  %s7 = sld [smem:[#allocation0]]
  $region38: #{tpu_custom_call.1} parent=0
    _
  %s9 = ssub.s32 1, %s7
  %s10 = scalar_select 0, %s9, %s7
  %11 = sst [smem:[#allocation4]] %s0
  $region1: #{tpu_custom_call.1} parent=0
    #allocation5 [shape = 'u8[8192]{0}', space=vmem, size = 0x2000, scoped, tag = 'output window, operand 0, single buffered']
    #allocation6 [shape = 's32[1]{0}', space=sflag, size = 0x4, scoped, tag = 'scoped memory for tpu_custom_call.1']
    %12 = vsyncpa [#allocation6], 0
    // Predicated region
    $region2: #{tpu_custom_call.1} parent=1 // pred_check
      _
    $region3: #{tpu_custom_call.1} parent=1 // pred_check_branch
      %14 = sbr.rel (0) target = $region5
    $region4: #{tpu_custom_call.1} parent=1 // pred_region
      _
    $region5: #{tpu_custom_call.1} parent=1 // pred_fallthru
      _
    // Predicated region
    $region6: #{tpu_custom_call.1} parent=1 // pred_check
      _
    $region7: #{tpu_custom_call.1} parent=1 // pred_check_branch
      %16 = sbr.rel (0) target = $region9
    $region8: #{tpu_custom_call.1} parent=1 // pred_region
      _
    $region9: #{tpu_custom_call.1} parent=1 // pred_fallthru
      _
    // Predicated region
    $region10: #{tpu_custom_call.1} parent=1 // pred_check
      _
    $region11: #{tpu_custom_call.1} parent=1 // pred_check_branch
      %18 = sbr.rel (0) target = $region13
    $region12: #{tpu_custom_call.1} parent=1 // pred_region
      _
    $region13: #{tpu_custom_call.1} parent=1 // pred_fallthru
      _
    // Predicated region
    $region14: #{tpu_custom_call.1} parent=1 // pred_check
      _
    $region15: #{tpu_custom_call.1} parent=1 // pred_check_branch
      %20 = sbr.rel (0) target = $region17
    $region16: #{tpu_custom_call.1} parent=1 // pred_region
      _
    $region17: #{tpu_custom_call.1} parent=1 // pred_fallthru
      _
    // Predicated region
    $region18: #{tpu_custom_call.1} parent=1 // pred_check
      _
    $region19: #{tpu_custom_call.1} parent=1 // pred_check_branch
      %22 = sbr.rel (0) target = $region21
    $region20: #{tpu_custom_call.1} parent=1 // pred_region
      _
    $region21: #{tpu_custom_call.1} parent=1 // pred_fallthru
      _
    %p23 = scmp.eq.s32.totalorder 0, 0
    // Predicated region
    $region22: #{tpu_custom_call.1} parent=1 // pred_check
      %p24 = pneg %p23
    $region23: #{tpu_custom_call.1} parent=1 // pred_check_branch
      %26 = sbr.rel (%p24) target = $region25
    $region24: #{tpu_custom_call.1} parent=1 // pred_region
      %vm27 = vcmask 261120
      %28 = vst.msk [vmem:[#allocation2] sm:$0xff] %vm27, 0.0
      %29 = vst.msk [vmem:[#allocation2 + $0x8] sm:$0xff] %vm27, 0.0
    $region25: #{tpu_custom_call.1} parent=1 // pred_fallthru
      _
    %v30 = vld [vmem:[%s1] sm:$0xff]
    %v31 = vld [vmem:[%s1 + $0x8] sm:$0xff]
    %v32 = vld [vmem:[%s2] sm:$0xff]
    %v33 = vld [vmem:[%s2 + $0x8] sm:$0xff]
    %v34 = vld [vmem:[%s2 + $0x10] sm:$0xff]
    %v35 = vld [vmem:[%s2 + $0x18] sm:$0xff]
    %v36 = vld [vmem:[%s3] sm:$0x1]
    %v38 = vlaneseq
    %v39 = vshrl.u32 %v38, 7
    %v40 = vsub.s32 0, %v39
    %v41 = vrot.slane %v36, %v40
    %vm43 = vcmask 261120
    %v45 = vsel %vm43, %v30, 0
    %v48 = vsel %vm43, %v31, 0
    %50 = vmatprep.subr.mxu0 0.0
    %51 = vmatpush1.msra.mxu0 0.0
    %52 = vmatprep.subr.mxu0 0.0
    %53 = vmatpush1.msra.mxu0 0.0
    %54 = vmatprep.subr.mxu0 0.0
    %55 = vmatpush1.msra.mxu0 0.0
    %56 = vmatprep.subr.mxu0 0.0
    %57 = vmatpush1.msra.mxu0 0.0
    %58 = vmatprep.subr.mxu0 0.0
    %59 = vmatpush1.msra.mxu0 0.0
    %60 = vmatprep.subr.mxu0 0.0
    %61 = vmatpush1.msra.mxu0 0.0
    %62 = vmatprep.subr.mxu0 0.0
    %63 = vmatpush1.msra.mxu0 0.0
    %64 = vmatprep.subr.mxu0 0.0
    %65 = vmatpush1.msra.mxu0 0.0
    %66 = vmatprep.subr.mxu0 0.0
    %67 = vmatpush1.msra.mxu0 0.0
    %68 = vmatprep.subr.mxu0 0.0
    %69 = vmatpush1.msra.mxu0 0.0
    %70 = vmatprep.subr.mxu0 0.0
    %71 = vmatpush1.msra.mxu0 0.0
    %72 = vmatprep.subr.mxu0 0.0
    %73 = vmatpush1.msra.mxu0 0.0
    %74 = vmatprep.subr.mxu0 0.0
    %75 = vmatpush1.msra.mxu0 %v35
    %76 = vmatprep.subr.mxu0 0.0
    %77 = vmatpush1.msra.mxu0 %v34
    %78 = vmatprep.subr.mxu0 0.0
    %79 = vmatpush1.msra.mxu0 %v33
    %80 = vmatprep.subr.mxu0 0.0
    %81 = vmatpush1.msra.mxu0 %v32
    %82 = vmatprep.subr.mxu0 0.0
    %83 = vmatpush2.msra.mxu0 0.0
    %84 = vmatprep.subr.mxu0 0.0
    %85 = vmatpush2.msra.mxu0 0.0
    %86 = vmatprep.subr.mxu0 0.0
    %87 = vmatpush2.msra.mxu0 0.0
    %88 = vmatprep.subr.mxu0 0.0
    %89 = vmatpush2.msra.mxu0 0.0
    %90 = vmatprep.subr.mxu0 0.0
    %91 = vmatpush2.msra.mxu0 0.0
    %92 = vmatprep.subr.mxu0 0.0
    %93 = vmatpush2.msra.mxu0 0.0
    %94 = vmatprep.subr.mxu0 0.0
    %95 = vmatpush2.msra.mxu0 0.0
    %96 = vmatprep.subr.mxu0 0.0
    %97 = vmatpush2.msra.mxu0 0.0
    %98 = vmatprep.subr.mxu0 0.0
    %99 = vmatpush2.msra.mxu0 0.0
    %100 = vmatprep.subr.mxu0 0.0
    %101 = vmatpush2.msra.mxu0 0.0
    %102 = vmatprep.subr.mxu0 0.0
    %103 = vmatpush2.msra.mxu0 0.0
    %104 = vmatprep.subr.mxu0 0.0
    %105 = vmatpush2.msra.mxu0 0.0
    %106 = vmatprep.subr.mxu0 0.0
    %107 = vmatpush2.msra.mxu0 0.0
    %108 = vmatprep.subr.mxu0 0.0
    %109 = vmatpush2.msra.mxu0 0.0
    %110 = vmatprep.subr.mxu0 0.0
    %111 = vmatpush2.msra.mxu0 0.0
    %112 = vmatprep.subr.mxu0 0.0
    %113 = vmatpush2.msra.mxu0 0.0
    %114 = vmatprep.mubr.f32.mxu0 0.0
    %115 = vmatmul.mubr.f32.gmra.mxu0 %v45
    %v116 = vpop.f32.mrf.mxu0
    %v117 = vadd.f32 %v41, %v116
    %v118 = vpop.f32.mrf.mxu0
    %119 = vmatprep.mubr.f32.mxu0 0.0
    %120 = vmatmul.mubr.f32.gmra.mxu0 %v48
    %v121 = vpop.f32.mrf.mxu0
    %v122 = vadd.f32 %v41, %v121
    %v123 = vpop.f32.mrf.mxu0
    %124 = vdwg.mxu0
    %v125 = vmax.f32 %v117, 0.0
    %v126 = vmax.f32 %v122, 0.0
    %v127 = vld [vmem:[%s4] sm:$0xff]
    %v128 = vld [vmem:[%s4 + $0x8] sm:$0xff]
    %v129 = vld [vmem:[%s4 + $0x10] sm:$0xff]
    %v130 = vld [vmem:[%s4 + $0x18] sm:$0xff]
    %v131 = vld [vmem:[%s4 + $0x20] sm:$0xff]
    %v132 = vld [vmem:[%s4 + $0x28] sm:$0xff]
    %v133 = vld [vmem:[%s4 + $0x30] sm:$0xff]
    %v134 = vld [vmem:[%s4 + $0x38] sm:$0xff]
    %v135 = vld [vmem:[%s4 + $0x40] sm:$0xff]
    %v136 = vld [vmem:[%s4 + $0x48] sm:$0xff]
    %v137 = vld [vmem:[%s4 + $0x50] sm:$0xff]
    %v138 = vld [vmem:[%s4 + $0x58] sm:$0xff]
    %v139 = vld [vmem:[%s4 + $0x60] sm:$0xff]
    %v140 = vld [vmem:[%s4 + $0x68] sm:$0xff]
    %v141 = vld [vmem:[%s4 + $0x70] sm:$0xff]
    %v142 = vld [vmem:[%s4 + $0x78] sm:$0xff]
    %v143 = vld [vmem:[#allocation2] sm:$0xff]
    %v144 = vld [vmem:[#allocation2 + $0x8] sm:$0xff]
    %145 = vmatprep.subr.mxu0 0.0
    %146 = vmatpush1.msra.mxu0 %v142
    %147 = vmatprep.subr.mxu0 0.0
    %148 = vmatpush1.msra.mxu0 %v141
    %149 = vmatprep.subr.mxu0 0.0
    %150 = vmatpush1.msra.mxu0 %v140
    %151 = vmatprep.subr.mxu0 0.0
    %152 = vmatpush1.msra.mxu0 %v139
    %153 = vmatprep.subr.mxu0 0.0
    %154 = vmatpush1.msra.mxu0 %v138
    %155 = vmatprep.subr.mxu0 0.0
    %156 = vmatpush1.msra.mxu0 %v137
    %157 = vmatprep.subr.mxu0 0.0
    %158 = vmatpush1.msra.mxu0 %v136
    %159 = vmatprep.subr.mxu0 0.0
    %160 = vmatpush1.msra.mxu0 %v135
    %161 = vmatprep.subr.mxu0 0.0
    %162 = vmatpush1.msra.mxu0 %v134
    %163 = vmatprep.subr.mxu0 0.0
    %164 = vmatpush1.msra.mxu0 %v133
    %165 = vmatprep.subr.mxu0 0.0
    %166 = vmatpush1.msra.mxu0 %v132
    %167 = vmatprep.subr.mxu0 0.0
    %168 = vmatpush1.msra.mxu0 %v131
    %169 = vmatprep.subr.mxu0 0.0
    %170 = vmatpush1.msra.mxu0 %v130
    %171 = vmatprep.subr.mxu0 0.0
    %172 = vmatpush1.msra.mxu0 %v129
    %173 = vmatprep.subr.mxu0 0.0
    %174 = vmatpush1.msra.mxu0 %v128
    %175 = vmatprep.subr.mxu0 0.0
    %176 = vmatpush1.msra.mxu0 %v127
    %177 = vmatprep.subr.mxu0 0.0
    %178 = vmatpush2.msra.mxu0 0.0
    %179 = vmatprep.subr.mxu0 0.0
    %180 = vmatpush2.msra.mxu0 0.0
    %181 = vmatprep.subr.mxu0 0.0
    %182 = vmatpush2.msra.mxu0 0.0
    %183 = vmatprep.subr.mxu0 0.0
    %184 = vmatpush2.msra.mxu0 0.0
    %185 = vmatprep.subr.mxu0 0.0
    %186 = vmatpush2.msra.mxu0 0.0
    %187 = vmatprep.subr.mxu0 0.0
    %188 = vmatpush2.msra.mxu0 0.0
    %189 = vmatprep.subr.mxu0 0.0
    %190 = vmatpush2.msra.mxu0 0.0
    %191 = vmatprep.subr.mxu0 0.0
    %192 = vmatpush2.msra.mxu0 0.0
    %193 = vmatprep.subr.mxu0 0.0
    %194 = vmatpush2.msra.mxu0 0.0
    %195 = vmatprep.subr.mxu0 0.0
    %196 = vmatpush2.msra.mxu0 0.0
    %197 = vmatprep.subr.mxu0 0.0
    %198 = vmatpush2.msra.mxu0 0.0
    %199 = vmatprep.subr.mxu0 0.0
    %200 = vmatpush2.msra.mxu0 0.0
    %201 = vmatprep.subr.mxu0 0.0
    %202 = vmatpush2.msra.mxu0 0.0
    %203 = vmatprep.subr.mxu0 0.0
    %204 = vmatpush2.msra.mxu0 0.0
    %205 = vmatprep.subr.mxu0 0.0
    %206 = vmatpush2.msra.mxu0 0.0
    %207 = vmatprep.subr.mxu0 0.0
    %208 = vmatpush2.msra.mxu0 0.0
    %209 = vmatprep.mubr.f32.mxu0 0.0
    %210 = vmatmul.mubr.f32.gmra.mxu0 %v125
    %v211 = vpop.f32.mrf.mxu0
    %v212 = vadd.f32 0.0, %v211
    %v213 = vpop.f32.mrf.mxu0
    %214 = vmatprep.mubr.f32.mxu0 0.0
    %215 = vmatmul.mubr.f32.gmra.mxu0 %v126
    %v216 = vpop.f32.mrf.mxu0
    %v217 = vadd.f32 0.0, %v216
    %v218 = vpop.f32.mrf.mxu0
    %219 = vdwg.mxu0
    %v220 = vadd.f32 %v143, %v212
    %v221 = vadd.f32 %v144, %v217
    %222 = vst.msk [vmem:[#allocation2] sm:$0xff] %vm43, %v220
    %223 = vst.msk [vmem:[#allocation2 + $0x8] sm:$0xff] %vm43, %v221
    // Predicated region
    $region26: #{tpu_custom_call.1} parent=1 // pred_check
      %p224 = pneg %p23
    $region27: #{tpu_custom_call.1} parent=1 // pred_check_branch
      %226 = sbr.rel (%p224) target = $region29
    $region28: #{tpu_custom_call.1} parent=1 // pred_region
      %v227 = vld [vmem:[#allocation2] sm:$0xff]
      %v228 = vld [vmem:[#allocation2 + $0x8] sm:$0xff]
      %v229 = vld [vmem:[%s5] sm:$0x1]
      %v231 = vlaneseq
      %v232 = vshrl.u32 %v231, 7
      %v233 = vsub.s32 0, %v232
      %v234 = vrot.slane %v229, %v233
      %v236 = vadd.f32 %v227, %v234
      %v237 = vadd.f32 %v228, %v234
      %238 = vst.msk [vmem:[#allocation5] sm:$0xff] %vm43, %v236
      %239 = vst.msk [vmem:[#allocation5 + $0x8] sm:$0xff] %vm43, %v237
    $region29: #{tpu_custom_call.1} parent=1 // pred_fallthru
      _
    // Predicated region
    $region30: #{tpu_custom_call.1} parent=1 // pred_check
      _
    $region31: #{tpu_custom_call.1} parent=1 // pred_check_branch
      %241 = sbr.rel (0) target = $region33
    $region32: #{tpu_custom_call.1} parent=1 // pred_region
      %s243 = ssub.s32 256, 256
      %244 = vsyncadd [#allocation6], %s243
      %s245 = sshll.u32 [#allocation5], 4
      %s246 = int_to_ptr.vmem [resolvable:$true] %s245
      %251 = dma.vmem_to_hbm [thread:$0]  %s246, 256, %s6, [#allocation6], 128, 128, 8
    $region33: #{tpu_custom_call.1} parent=1 // pred_fallthru
      _
    // Predicated region
    $region34: #{tpu_custom_call.1} parent=1 // pred_check
      _
    $region35: #{tpu_custom_call.1} parent=1 // pred_check_branch
      %253 = sbr.rel (0) target = $region37
    $region36: #{tpu_custom_call.1} parent=1 // pred_region
      %254 = dma.done [#allocation6], 256
    $region37: #{tpu_custom_call.1} parent=1 // pred_fallthru
      _
    %255 = vsyncpa [#allocation6], 1

</llo_original>
